<compile_context>
chip_gen: v5e
topology: v5e:2x2
jax: 0.10.0
libtpu: 0.0.40
codegen_flags: <defaults>
</compile_context>

<pallas_src>
import functools

import jax
import jax.numpy as jnp
from jax.experimental import pallas as pl
from jax.experimental.pallas import tpu as pltpu

_NEG_INF = -1e30  # "minus infinity" for padded logit lanes (exp underflows to 0)


# ----------------------------------------------------------------------------
# Kernel
# ----------------------------------------------------------------------------
def _policy_kernel(s_ref, w1_ref, b1_ref, w2_ref, b2_ref, w3_ref, b3_ref,
                   out_ref):
    w_dtype = w1_ref.dtype                      # bf16 (default) or f32
    x = s_ref[...].astype(w_dtype)              # cast on VPU; no extra HBM bytes

    # 3 MXU matmuls (f32 accumulation), ReLU on the VPU, biases in f32.
    h1 = jnp.dot(x, w1_ref[...], preferred_element_type=jnp.float32) + b1_ref[...]
    h1 = jnp.maximum(h1, 0.0)

    h2 = jnp.dot(h1.astype(w_dtype), w2_ref[...],
                 preferred_element_type=jnp.float32) + b2_ref[...]
    h2 = jnp.maximum(h2, 0.0)

    logits = jnp.dot(h2.astype(w_dtype), w3_ref[...],
                     preferred_element_type=jnp.float32) + b3_ref[...]
    # Padded action lanes carry bias = -1e30 -> exp() == 0 -> zero probability.

    # Numerically stable softmax over the last (lane) axis == PyTorch dim=1.
    m = jnp.max(logits, axis=-1, keepdims=True)
    e = jnp.exp(logits - m)
    denom = jnp.sum(e, axis=-1, keepdims=True)
    out_ref[...] = (e / denom).astype(out_ref.dtype)   # exact normalization


# ----------------------------------------------------------------------------
# Helpers
# ----------------------------------------------------------------------------
def _rup(x, m):
    return ((x + m - 1) // m) * m


def _cdiv(a, b):
    return -(-a // b)


def _pad2(a, rows, cols, dtype, fill=0.0):
    a = jnp.asarray(a)
    if a.ndim == 1:
        a = a.reshape(1, -1)
    out = jnp.full((rows, cols), fill, dtype)
    return out.at[:a.shape[0], :a.shape[1]].set(a.astype(dtype))


def _const_spec(shape, single_buffer):
    """BlockSpec for VMEM-resident weights/biases (same block every step)."""
    index_map = lambda i: (0, 0)
    if single_buffer and hasattr(pl, "Buffered"):
        try:
            # Block never changes -> one buffer is enough; halves weight VMEM
            # (matters on v7x's 64 MiB VMEM with large hid_shape).
            return pl.BlockSpec(shape, index_map, pipeline_mode=pl.Buffered(1))
        except TypeError:
            pass
    return pl.BlockSpec(shape, index_map)


def _auto_vmem_limit(tb, state_dim, d1, d2, da, s_dtype, w_dtype, out_dtype,
                     single_buffer_weights):
    """Size vmem_limit_bytes from actual buffers, capped per TPU generation."""
    w_item = jnp.dtype(w_dtype).itemsize
    s_item = jnp.dtype(s_dtype).itemsize
    o_item = jnp.dtype(out_dtype).itemsize
    w_bufs = 1 if single_buffer_weights else 2
    weight_bytes = w_bufs * ((state_dim * d1 + d1 * d2 + d2 * da) * w_item
                             + (d1 + d2 + da) * 4)          # biases kept f32
    io_bytes = 2 * tb * (state_dim * s_item + da * o_item)  # double-buffered tiles
    act_bytes = tb * (d1 + d2 + 2 * da) * 4                 # f32 intermediates
    needed = int(1.5 * (weight_bytes + io_bytes + act_bytes)) + (4 << 20)
    try:
        cap = int(pltpu.get_tpu_info().vmem_capacity_bytes)  # 128 MiB v5e/v6e, 64 MiB v7x
    except Exception:
        cap = 64 << 20                                       # conservative (v7x)
    return max(16 << 20, min(needed, int(0.9 * cap)))


# ----------------------------------------------------------------------------
# Forward (called with pre-padded, pre-cast params)
# ----------------------------------------------------------------------------
def _policy_forward(s, w1_p, b1_p, w2_p, b2_p, w3_p, b3_p, *,
                    action_dim, tile_b, probs_dtype, single_buffer_weights):
    B, state_dim = s.shape
    d1, d2, da = w1_p.shape[1], w2_p.shape[1], w3_p.shape[1]

    # Batch tile: multiple of 8 sublanes, capped by tile_b; keep >=2 grid
    # steps when the batch allows it so v7x's two TensorCores both get work.
    tb = max(8, _rup(min(tile_b, B), 8))
    if B > 8:
        tb = min(tb, max(8, _rup(_cdiv(B, 2), 8)))
    grid = (_cdiv(B, tb),)

    vmem_limit = _auto_vmem_limit(tb, state_dim, d1, d2, da, s.dtype,
                                  w1_p.dtype, probs_dtype,
                                  single_buffer_weights)

    wspec = lambda shape: _const_spec(shape, single_buffer_weights)

    out = pl.pallas_call(
        _policy_kernel,
        out_shape=jax.ShapeDtypeStruct((B, da), probs_dtype),
        grid=grid,
        in_specs=[
            # States: batch-tiled, feature dim unpadded (last dim == full dim).
            pl.BlockSpec((tb, state_dim), lambda i: (i, 0)),
            wspec((state_dim, d1)), wspec((1, d1)),
            wspec((d1, d2)), wspec((1, d2)),
            wspec((d2, da)), wspec((1, da)),
        ],
        out_specs=pl.BlockSpec((tb, da), lambda i: (i, 0)),   # lane-dense vst
        compiler_params=pltpu.CompilerParams(
            dimension_semantics=("parallel",),  # batch steps shard across TCs
            vmem_limit_bytes=vmem_limit,
        ),
    )(s, w1_p, b1_p, w2_p, b2_p, w3_p, b3_p)

    return out[:, :action_dim]


# ----------------------------------------------------------------------------
# Module-like wrapper: pad/cast weights ONCE, forward only streams states.
# ----------------------------------------------------------------------------
class PolicyNetPallas:
    """probs = softmax(ReLU(ReLU(s@W1+b1)@W2+b2)@W3+b3, axis=1)."""

    def __init__(self, w1, b1, w2, b2, w3, b3, *, use_bf16=True, tile_b=512,
                 probs_dtype=jnp.float32, single_buffer_weights=True):
        w1 = jnp.asarray(w1); w2 = jnp.asarray(w2); w3 = jnp.asarray(w3)
        state_dim, h1_dim = w1.shape
        h2_dim = w2.shape[1]
        action_dim = w3.shape[1]
        d1, d2, da = _rup(h1_dim, 128), _rup(h2_dim, 128), _rup(action_dim, 128)
        mxu_dtype = jnp.bfloat16 if use_bf16 else jnp.float32

        # One-time padding/casting (hoisted out of the per-call path).
        # NOTE: activations are quantized to bf16 between layers when
        # use_bf16=True; accumulation, biases, ReLU and softmax remain f32.
        self._params = (
            _pad2(w1, state_dim, d1, mxu_dtype),
            _pad2(b1, 1, d1, jnp.float32),
            _pad2(w2, d1, d2, mxu_dtype),
            _pad2(b2, 1, d2, jnp.float32),
            _pad2(w3, d2, da, mxu_dtype),
            _pad2(b3, 1, da, jnp.float32, fill=_NEG_INF),  # kill padded actions
        )
        self._fwd = jax.jit(functools.partial(
            _policy_forward, action_dim=action_dim, tile_b=tile_b,
            probs_dtype=probs_dtype,
            single_buffer_weights=single_buffer_weights))

    def __call__(self, s):
        # Callers may pass bf16 states to halve the dominant HBM stream.
        return self._fwd(s, *self._params)


# ----------------------------------------------------------------------------
# Param init mimicking torch.nn.Linear default (U[-1/sqrt(fan_in), +]).
# ----------------------------------------------------------------------------
def init_policy_params(key, state_dim, hid_shape, action_dim):
    dims = [state_dim] + list(hid_shape) + [action_dim]
    params = []
    for i in range(len(dims) - 1):
        key, kw, kb = jax.random.split(key, 3)
        bound = 1.0 / jnp.sqrt(jnp.float32(dims[i]))
        w = jax.random.uniform(kw, (dims[i], dims[i + 1]), jnp.float32,
                               minval=-bound, maxval=bound)
        b = jax.random.uniform(kb, (1, dims[i + 1]), jnp.float32,
                               minval=-bound, maxval=bound)
        params += [w, b]
    return params


def _reference_forward(s, w1, b1, w2, b2, w3, b3):
    h1 = jnp.maximum(s @ w1 + b1, 0.0)
    h2 = jnp.maximum(h1 @ w2 + b2, 0.0)
    return jax.nn.softmax(h2 @ w3 + b3, axis=1)


if __name__ == "__main__":
    key = jax.random.PRNGKey(0)
    batch, state_dim, hid_shape, action_dim = 4, 16, (32, 32), 8

    key, ks = jax.random.split(key)
    s = jax.random.normal(ks, (batch, state_dim), jnp.float32)
    w1, b1, w2, b2, w3, b3 = init_policy_params(key, state_dim, hid_shape,
                                                action_dim)
    ref = _reference_forward(s, w1, b1, w2, b2, w3, b3)

    # Default path: bf16 MXU inputs (weights pre-cast once), f32 softmax.
    net = PolicyNetPallas(w1, b1, w2, b2, w3, b3)
    probs = jax.block_until_ready(net(s))
    assert probs.shape == (batch, action_dim)
    # Loose tolerance: activations are bf16-quantized between layers.
    assert bool(jnp.allclose(probs, ref, atol=5e-2))
    # Exact divide -> rows sum to 1 to f32 rounding.
    assert bool(jnp.allclose(jnp.sum(probs, axis=1), 1.0, atol=1e-3))

    # Full-f32 path reproduces the PyTorch f32 numerics tightly.
    net32 = PolicyNetPallas(w1, b1, w2, b2, w3, b3, use_bf16=False)
    probs32 = jax.block_until_ready(net32(s))
    assert probs32.shape == (batch, action_dim)
    assert bool(jnp.allclose(probs32, ref, atol=1e-3, rtol=1e-3))
    assert bool(jnp.allclose(jnp.sum(probs32, axis=1), 1.0, atol=1e-3))

    print("KERNEL_OK")
</pallas_src>

<mosaic_0001>
module attributes {stable_mosaic.version = 11 : i64} {
  func.func @_policy_kernel(%arg0: i32, %arg1: memref<8x16xf32, #tpu.memory_space<vmem>>, %arg2: memref<16x128xbf16, #tpu.memory_space<vmem>>, %arg3: memref<1x128xf32, #tpu.memory_space<vmem>>, %arg4: memref<128x128xbf16, #tpu.memory_space<vmem>>, %arg5: memref<1x128xf32, #tpu.memory_space<vmem>>, %arg6: memref<128x128xbf16, #tpu.memory_space<vmem>>, %arg7: memref<1x128xf32, #tpu.memory_space<vmem>>, %arg8: memref<8x128xf32, #tpu.memory_space<vmem>>) attributes {dimension_semantics = [#tpu.dimension_semantics<parallel>], iteration_bounds = array<i64: 1>, scalar_prefetch = 0 : i64, scratch_operands = 0 : i64, tpu.core_type = #tpu.core_type<tc>, window_params = [{transform_indices = @transform_0, window_bounds = array<i64: 8, 16>}, {pipeline_mode = #tpu.pipeline_mode<synchronous>, transform_indices = @transform_1, window_bounds = array<i64: 16, 128>}, {pipeline_mode = #tpu.pipeline_mode<synchronous>, transform_indices = @transform_2, window_bounds = array<i64: 1, 128>}, {pipeline_mode = #tpu.pipeline_mode<synchronous>, transform_indices = @transform_3, window_bounds = array<i64: 128, 128>}, {pipeline_mode = #tpu.pipeline_mode<synchronous>, transform_indices = @transform_4, window_bounds = array<i64: 1, 128>}, {pipeline_mode = #tpu.pipeline_mode<synchronous>, transform_indices = @transform_5, window_bounds = array<i64: 128, 128>}, {pipeline_mode = #tpu.pipeline_mode<synchronous>, transform_indices = @transform_6, window_bounds = array<i64: 1, 128>}, {transform_indices = @transform_7, window_bounds = array<i64: 8, 128>}]} {
    %c0 = arith.constant 0 : index
    %c0_0 = arith.constant 0 : index
    %0 = vector.load %arg1[%c0, %c0_0] : memref<8x16xf32, #tpu.memory_space<vmem>>, vector<8x16xf32>
    %1 = arith.truncf %0 : vector<8x16xf32> to vector<8x16xbf16>
    %c0_1 = arith.constant 0 : index
    %c0_2 = arith.constant 0 : index
    %2 = vector.load %arg2[%c0_1, %c0_2] : memref<16x128xbf16, #tpu.memory_space<vmem>>, vector<16x128xbf16>
    %cst = arith.constant dense<0.000000e+00> : vector<8x128xf32>
    %3 = tpu.matmul %1, %2, %cst {dimension_numbers = #tpu.dot_dimension_numbers<[1], [0], [0], [1], [0, 0, 1, 1], [], []>} : vector<8x16xbf16>, vector<16x128xbf16>, vector<8x128xf32> -> vector<8x128xf32>
    %c0_3 = arith.constant 0 : index
    %c0_4 = arith.constant 0 : index
    %4 = vector.load %arg3[%c0_3, %c0_4] : memref<1x128xf32, #tpu.memory_space<vmem>>, vector<1x128xf32>
    %5 = vector.broadcast %4 : vector<1x128xf32> to vector<8x128xf32>
    %6 = arith.addf %3, %5 : vector<8x128xf32>
    %cst_5 = arith.constant 0.000000e+00 : f32
    %7 = vector.broadcast %cst_5 : f32 to vector<8x128xf32>
    %8 = arith.maximumf %6, %7 : vector<8x128xf32>
    %9 = arith.truncf %8 : vector<8x128xf32> to vector<8x128xbf16>
    %c0_6 = arith.constant 0 : index
    %c0_7 = arith.constant 0 : index
    %10 = vector.load %arg4[%c0_6, %c0_7] : memref<128x128xbf16, #tpu.memory_space<vmem>>, vector<128x128xbf16>
    %cst_8 = arith.constant dense<0.000000e+00> : vector<8x128xf32>
    %11 = tpu.matmul %9, %10, %cst_8 {dimension_numbers = #tpu.dot_dimension_numbers<[1], [0], [0], [1], [0, 0, 1, 1], [], []>} : vector<8x128xbf16>, vector<128x128xbf16>, vector<8x128xf32> -> vector<8x128xf32>
    %c0_9 = arith.constant 0 : index
    %c0_10 = arith.constant 0 : index
    %12 = vector.load %arg5[%c0_9, %c0_10] : memref<1x128xf32, #tpu.memory_space<vmem>>, vector<1x128xf32>
    %13 = vector.broadcast %12 : vector<1x128xf32> to vector<8x128xf32>
    %14 = arith.addf %11, %13 : vector<8x128xf32>
    %cst_11 = arith.constant 0.000000e+00 : f32
    %15 = vector.broadcast %cst_11 : f32 to vector<8x128xf32>
    %16 = arith.maximumf %14, %15 : vector<8x128xf32>
    %17 = arith.truncf %16 : vector<8x128xf32> to vector<8x128xbf16>
    %c0_12 = arith.constant 0 : index
    %c0_13 = arith.constant 0 : index
    %18 = vector.load %arg6[%c0_12, %c0_13] : memref<128x128xbf16, #tpu.memory_space<vmem>>, vector<128x128xbf16>
    %cst_14 = arith.constant dense<0.000000e+00> : vector<8x128xf32>
    %19 = tpu.matmul %17, %18, %cst_14 {dimension_numbers = #tpu.dot_dimension_numbers<[1], [0], [0], [1], [0, 0, 1, 1], [], []>} : vector<8x128xbf16>, vector<128x128xbf16>, vector<8x128xf32> -> vector<8x128xf32>
    %c0_15 = arith.constant 0 : index
    %c0_16 = arith.constant 0 : index
    %20 = vector.load %arg7[%c0_15, %c0_16] : memref<1x128xf32, #tpu.memory_space<vmem>>, vector<1x128xf32>
    %21 = vector.broadcast %20 : vector<1x128xf32> to vector<8x128xf32>
    %22 = arith.addf %19, %21 : vector<8x128xf32>
    %cst_17 = arith.constant dense<0xFF800000> : vector<8xf32>
    %23 = vector.multi_reduction <maximumf>, %22, %cst_17 [1] : vector<8x128xf32> to vector<8xf32>
    %24 = vector.shape_cast %23 : vector<8xf32> to vector<8x1xf32>
    %25 = vector.broadcast %24 : vector<8x1xf32> to vector<8x128xf32>
    %26 = arith.subf %22, %25 : vector<8x128xf32>
    %27 = math.exp %26 : vector<8x128xf32>
    %cst_18 = arith.constant dense<0.000000e+00> : vector<8xf32>
    %28 = vector.multi_reduction <add>, %27, %cst_18 [1] : vector<8x128xf32> to vector<8xf32>
    %29 = vector.shape_cast %28 : vector<8xf32> to vector<8x1xf32>
    %30 = vector.broadcast %29 : vector<8x1xf32> to vector<8x128xf32>
    %31 = arith.divf %27, %30 : vector<8x128xf32>
    %c0_19 = arith.constant 0 : index
    %c0_20 = arith.constant 0 : index
    %32 = vector.load %arg8[%c0_19, %c0_20] : memref<8x128xf32, #tpu.memory_space<vmem>>, vector<8x128xf32>
    tpu.vector_store %arg8[%c0_19, %c0_20], %31 {strides = array<i32>} : memref<8x128xf32, #tpu.memory_space<vmem>>, vector<8x128xf32>,
    return
  }
  func.func @transform_0(%arg0: i32) -> (i32, i32) {
    %c0_i32 = arith.constant 0 : i32
    %c0_i32_0 = arith.constant 0 : i32
    return %arg0, %c0_i32 : i32, i32
  }
  func.func @transform_1(%arg0: i32) -> (i32, i32) {
    %c0_i32 = arith.constant 0 : i32
    %c0_i32_0 = arith.constant 0 : i32
    %c0_i32_1 = arith.constant 0 : i32
    return %c0_i32, %c0_i32_0 : i32, i32
  }
  func.func @transform_2(%arg0: i32) -> (i32, i32) {
    %c0_i32 = arith.constant 0 : i32
    %c0_i32_0 = arith.constant 0 : i32
    %c0_i32_1 = arith.constant 0 : i32
    return %c0_i32, %c0_i32_0 : i32, i32
  }
  func.func @transform_3(%arg0: i32) -> (i32, i32) {
    %c0_i32 = arith.constant 0 : i32
    %c0_i32_0 = arith.constant 0 : i32
    %c0_i32_1 = arith.constant 0 : i32
    return %c0_i32, %c0_i32_0 : i32, i32
  }
  func.func @transform_4(%arg0: i32) -> (i32, i32) {
    %c0_i32 = arith.constant 0 : i32
    %c0_i32_0 = arith.constant 0 : i32
    %c0_i32_1 = arith.constant 0 : i32
    return %c0_i32, %c0_i32_0 : i32, i32
  }
  func.func @transform_5(%arg0: i32) -> (i32, i32) {
    %c0_i32 = arith.constant 0 : i32
    %c0_i32_0 = arith.constant 0 : i32
    %c0_i32_1 = arith.constant 0 : i32
    return %c0_i32, %c0_i32_0 : i32, i32
  }
  func.func @transform_6(%arg0: i32) -> (i32, i32) {
    %c0_i32 = arith.constant 0 : i32
    %c0_i32_0 = arith.constant 0 : i32
    %c0_i32_1 = arith.constant 0 : i32
    return %c0_i32, %c0_i32_0 : i32, i32
  }
  func.func @transform_7(%arg0: i32) -> (i32, i32) {
    %c0_i32 = arith.constant 0 : i32
    %c0_i32_0 = arith.constant 0 : i32
    return %arg0, %c0_i32 : i32, i32
  }
}

</mosaic_0001>

<llo_original>
// kernel: _policy_forward.1
$region0: #{_policy_forward.1}
  #allocation0 [shape = 'u32[]', space=smem, size = 0x4, offset = 0x4, fixed_abs, tag = 'smem constant byte address 0x4 - core index']
  #allocation1 [shape = 'u32[72,128]{1,0:T(1,128)}', space=vmem, size = 0x9000, scoped, tag = 'internal scratch']
  %s0 = inlined_call_operand.hbm [shape: f32[4,16], index: 0, kind: input, shape index: {}]
  %s1 = inlined_call_operand.hbm [shape: bf16[16,128], index: 1, kind: input, shape index: {}]
  %s2 = inlined_call_operand.vmem [shape: f32[1,128], index: 2, kind: input, shape index: {}]
  %s3 = inlined_call_operand.hbm [shape: bf16[128,128], index: 3, kind: input, shape index: {}]
  %s4 = inlined_call_operand.vmem [shape: f32[1,128], index: 4, kind: input, shape index: {}]
  %s5 = inlined_call_operand.hbm [shape: bf16[128,128], index: 5, kind: input, shape index: {}]
  %s6 = inlined_call_operand.vmem [shape: f32[1,128], index: 6, kind: input, shape index: {}]
  %s7 = inlined_call_operand.hbm [shape: f32[4,128], index: 7, kind: output, shape index: {}]
  %s8 = sld [smem:[#allocation0]]
  $region54: #{_policy_forward.1} parent=0
    _
  %s10 = ssub.s32 1, %s8
  %s11 = scalar_select 0, %s10, %s8
  $region1: #{_policy_forward.1} parent=0
    #allocation2 [shape = 'u8[4096]{0}', space=vmem, size = 0x1000, scoped, tag = 'input window, operand 0, single buffered']
    #allocation3 [shape = 's32[1]{0}', space=sflag, size = 0x4, scoped, tag = 'scoped memory for _policy_forward.1']
    #allocation4 [shape = 's32[1]{0}', space=sflag, size = 0x4, scoped, tag = 'scoped memory for _policy_forward.1']
    #allocation5 [shape = 'u8[4096]{0}', space=vmem, size = 0x1000, scoped, tag = 'input window, operand 1, single buffered']
    #allocation6 [shape = 's32[1]{0}', space=sflag, size = 0x4, scoped, tag = 'scoped memory for _policy_forward.1']
    #allocation7 [shape = 'u8[32768]{0}', space=vmem, size = 0x8000, scoped, tag = 'input window, operand 3, single buffered']
    #allocation8 [shape = 'u8[32768]{0}', space=vmem, size = 0x8000, scoped, tag = 'input window, operand 5, single buffered']
    #allocation9 [shape = 's32[1]{0}', space=sflag, size = 0x4, scoped, tag = 'scoped memory for _policy_forward.1']
    #allocation10 [shape = 'u8[4096]{0}', space=vmem, size = 0x1000, scoped, tag = 'output window, operand 0, single buffered']
    %12 = vsyncpa [#allocation3], 0
    %13 = vsyncpa [#allocation6], 0
    %14 = vsyncpa [#allocation9], 0
    %15 = vsyncpa [#allocation4], 0
    // Predicated region
    $region2: #{_policy_forward.1} parent=1 // pred_check
      _
    $region3: #{_policy_forward.1} parent=1 // pred_check_branch
      %17 = sbr.rel (0) target = $region5
    $region4: #{_policy_forward.1} parent=1 // pred_region
      %19 = vsyncadd [#allocation3], 64
      %s20 = sshll.u32 %s0, 4
      %s21 = int_to_ptr.hbm [resolvable:$true] %s20
      %s22 = sshll.u32 [#allocation2], 4
      %s23 = int_to_ptr.vmem [resolvable:$true] %s22
      %28 = dma.hbm_to_vmem [thread:$0]  %s21, 64, %s23, [#allocation3], 64, 64, 4
    $region5: #{_policy_forward.1} parent=1 // pred_fallthru
      _
    // Predicated region
    $region6: #{_policy_forward.1} parent=1 // pred_check
      _
    $region7: #{_policy_forward.1} parent=1 // pred_check_branch
      %30 = sbr.rel (0) target = $region9
    $region8: #{_policy_forward.1} parent=1 // pred_region
      %32 = vsyncadd [#allocation6], 0
      %s33 = sshll.u32 %s1, 4
      %s34 = int_to_ptr.hbm [resolvable:$true] %s33
      %s35 = sshll.u32 [#allocation5], 4
      %s36 = int_to_ptr.vmem [resolvable:$true] %s35
      %41 = dma.hbm_to_vmem [thread:$0]  %s34, 128, %s36, [#allocation6], 64, 64, 4
    $region9: #{_policy_forward.1} parent=1 // pred_fallthru
      _
    // Predicated region
    $region10: #{_policy_forward.1} parent=1 // pred_check
      _
    $region11: #{_policy_forward.1} parent=1 // pred_check_branch
      %43 = sbr.rel (0) target = $region13
    $region12: #{_policy_forward.1} parent=1 // pred_region
      _
    $region13: #{_policy_forward.1} parent=1 // pred_fallthru
      _
    // Predicated region
    $region14: #{_policy_forward.1} parent=1 // pred_check
      _
    $region15: #{_policy_forward.1} parent=1 // pred_check_branch
      %45 = sbr.rel (0) target = $region17
    $region16: #{_policy_forward.1} parent=1 // pred_region
      %47 = vsyncadd [#allocation6], 0
      %s48 = sshll.u32 %s3, 4
      %s49 = int_to_ptr.hbm [resolvable:$true] %s48
      %s50 = sshll.u32 [#allocation7], 4
      %s51 = int_to_ptr.vmem [resolvable:$true] %s50
      %56 = dma.hbm_to_vmem [thread:$0]  %s49, 1024, %s51, [#allocation6], 64, 64, 4
    $region17: #{_policy_forward.1} parent=1 // pred_fallthru
      _
    // Predicated region
    $region18: #{_policy_forward.1} parent=1 // pred_check
      _
    $region19: #{_policy_forward.1} parent=1 // pred_check_branch
      %58 = sbr.rel (0) target = $region21
    $region20: #{_policy_forward.1} parent=1 // pred_region
      _
    $region21: #{_policy_forward.1} parent=1 // pred_fallthru
      _
    // Predicated region
    $region22: #{_policy_forward.1} parent=1 // pred_check
      _
    $region23: #{_policy_forward.1} parent=1 // pred_check_branch
      %60 = sbr.rel (0) target = $region25
    $region24: #{_policy_forward.1} parent=1 // pred_region
      %62 = vsyncadd [#allocation9], 0
      %s63 = sshll.u32 %s5, 4
      %s64 = int_to_ptr.hbm [resolvable:$true] %s63
      %s65 = sshll.u32 [#allocation8], 4
      %s66 = int_to_ptr.vmem [resolvable:$true] %s65
      %71 = dma.hbm_to_vmem [thread:$0]  %s64, 1024, %s66, [#allocation9], 64, 64, 4
    $region25: #{_policy_forward.1} parent=1 // pred_fallthru
      _
    // Predicated region
    $region26: #{_policy_forward.1} parent=1 // pred_check
      _
    $region27: #{_policy_forward.1} parent=1 // pred_check_branch
      %73 = sbr.rel (0) target = $region29
    $region28: #{_policy_forward.1} parent=1 // pred_region
      _
    $region29: #{_policy_forward.1} parent=1 // pred_fallthru
      _
    // Predicated region
    $region30: #{_policy_forward.1} parent=1 // pred_check
      _
    $region31: #{_policy_forward.1} parent=1 // pred_check_branch
      %75 = sbr.rel (0) target = $region33
    $region32: #{_policy_forward.1} parent=1 // pred_region
      %77 = dma.done [#allocation3], 128
    $region33: #{_policy_forward.1} parent=1 // pred_fallthru
      _
    // Predicated region
    $region34: #{_policy_forward.1} parent=1 // pred_check
      _
    $region35: #{_policy_forward.1} parent=1 // pred_check_branch
      %79 = sbr.rel (0) target = $region37
    $region36: #{_policy_forward.1} parent=1 // pred_region
      %81 = dma.done [#allocation6], 128
    $region37: #{_policy_forward.1} parent=1 // pred_fallthru
      _
    // Predicated region
    $region38: #{_policy_forward.1} parent=1 // pred_check
      _
    $region39: #{_policy_forward.1} parent=1 // pred_check_branch
      %83 = sbr.rel (0) target = $region41
    $region40: #{_policy_forward.1} parent=1 // pred_region
      %85 = dma.done [#allocation6], 1024
    $region41: #{_policy_forward.1} parent=1 // pred_fallthru
      _
    // Predicated region
    $region42: #{_policy_forward.1} parent=1 // pred_check
      _
    $region43: #{_policy_forward.1} parent=1 // pred_check_branch
      %87 = sbr.rel (0) target = $region45
    $region44: #{_policy_forward.1} parent=1 // pred_region
      %89 = dma.done [#allocation9], 1024
    $region45: #{_policy_forward.1} parent=1 // pred_fallthru
      _
    %v91 = vld [vmem:[#allocation2] sm:$0xff]
    %v92 = vpack.c.bf16 %v91, %v91
    %v93 = vld [vmem:[#allocation5] sm:$0xf]
    %v94 = vld [vmem:[#allocation5 + $0x4] sm:$0xf]
    %v95 = vld [vmem:[%s2] sm:$0x1]
    %v97 = vperm.slane %v95, 0
    %v101 = vunpack.c.l.b16 %v93
    %v102 = vunpack.c.l.b16 %v94
    %v103 = vpack.c.b16 %v102, %v101
    %vm105 = vcmask 130048
    %v107 = vsel %vm105, %v92, 0
    %109 = vmatpush.bf16.msra.mxu0 0
    %110 = vmatpush.bf16.msra.mxu0 0
    %111 = vmatpush.bf16.msra.mxu0 0
    %112 = vmatpush.bf16.msra.mxu0 0
    %113 = vmatpush.bf16.msra.mxu0 0
    %114 = vmatpush.bf16.msra.mxu0 0
    %115 = vmatpush.bf16.msra.mxu0 0
    %116 = vmatpush.bf16.msra.mxu0 %v103
    %117 = vmatmul.bf16.gmra.mxu0 %v107
    %v118 = vpop.f32.mrf.mxu0
    %v119 = vadd.f32 %v97, %v118
    %v120 = vpop.f32.mrf.mxu0
    %121 = vdwg.mxu0
    %v122 = vmax.f32 %v119, 0.0
    %v123 = vpack.c.bf16 %v122, %v122
    %v124 = vld [vmem:[#allocation7] sm:$0xf]
    %v125 = vld [vmem:[#allocation7 + $0x4] sm:$0xf]
    %v126 = vld [vmem:[#allocation7 + $0x8] sm:$0xf]
    %v127 = vld [vmem:[#allocation7 + $0xc] sm:$0xf]
    %v128 = vld [vmem:[#allocation7 + $0x10] sm:$0xf]
    %v129 = vld [vmem:[#allocation7 + $0x14] sm:$0xf]
    %v130 = vld [vmem:[#allocation7 + $0x18] sm:$0xf]
    %v131 = vld [vmem:[#allocation7 + $0x1c] sm:$0xf]
    %v132 = vld [vmem:[#allocation7 + $0x20] sm:$0xf]
    %v133 = vld [vmem:[#allocation7 + $0x24] sm:$0xf]
    %v134 = vld [vmem:[#allocation7 + $0x28] sm:$0xf]
    %v135 = vld [vmem:[#allocation7 + $0x2c] sm:$0xf]
    %v136 = vld [vmem:[#allocation7 + $0x30] sm:$0xf]
    %v137 = vld [vmem:[#allocation7 + $0x34] sm:$0xf]
    %v138 = vld [vmem:[#allocation7 + $0x38] sm:$0xf]
    %v139 = vld [vmem:[#allocation7 + $0x3c] sm:$0xf]
    %v140 = vld [vmem:[%s4] sm:$0x1]
    %v142 = vperm.slane %v140, 0
    %v160 = vunpack.c.l.b16 %v124
    %v161 = vunpack.c.l.b16 %v125
    %v162 = vunpack.c.l.b16 %v126
    %v163 = vunpack.c.l.b16 %v127
    %v164 = vunpack.c.l.b16 %v128
    %v165 = vunpack.c.l.b16 %v129
    %v166 = vunpack.c.l.b16 %v130
    %v167 = vunpack.c.l.b16 %v131
    %v168 = vunpack.c.l.b16 %v132
    %v169 = vunpack.c.l.b16 %v133
    %v170 = vunpack.c.l.b16 %v134
    %v171 = vunpack.c.l.b16 %v135
    %v172 = vunpack.c.l.b16 %v136
    %v173 = vunpack.c.l.b16 %v137
    %v174 = vunpack.c.l.b16 %v138
    %v175 = vunpack.c.l.b16 %v139
    %v176 = vpack.c.b16 %v161, %v160
    %v177 = vpack.c.b16 %v163, %v162
    %v178 = vpack.c.b16 %v165, %v164
    %v179 = vpack.c.b16 %v167, %v166
    %v180 = vpack.c.b16 %v169, %v168
    %v181 = vpack.c.b16 %v171, %v170
    %v182 = vpack.c.b16 %v173, %v172
    %v183 = vpack.c.b16 %v175, %v174
    %192 = vmatpush.bf16.msra.mxu0 %v183
    %193 = vmatpush.bf16.msra.mxu0 %v182
    %194 = vmatpush.bf16.msra.mxu0 %v181
    %195 = vmatpush.bf16.msra.mxu0 %v180
    %196 = vmatpush.bf16.msra.mxu0 %v179
    %197 = vmatpush.bf16.msra.mxu0 %v178
    %198 = vmatpush.bf16.msra.mxu0 %v177
    %199 = vmatpush.bf16.msra.mxu0 %v176
    %200 = vmatmul.bf16.gmra.mxu0 %v123
    %v201 = vpop.f32.mrf.mxu0
    %v202 = vadd.f32 %v142, %v201
    %v203 = vpop.f32.mrf.mxu0
    %204 = vdwg.mxu0
    %v205 = vmax.f32 %v202, 0.0
    %v206 = vpack.c.bf16 %v205, %v205
    %v207 = vld [vmem:[#allocation8] sm:$0xf]
    %v208 = vld [vmem:[#allocation8 + $0x4] sm:$0xf]
    %v209 = vld [vmem:[#allocation8 + $0x8] sm:$0xf]
    %v210 = vld [vmem:[#allocation8 + $0xc] sm:$0xf]
    %v211 = vld [vmem:[#allocation8 + $0x10] sm:$0xf]
    %v212 = vld [vmem:[#allocation8 + $0x14] sm:$0xf]
    %v213 = vld [vmem:[#allocation8 + $0x18] sm:$0xf]
    %v214 = vld [vmem:[#allocation8 + $0x1c] sm:$0xf]
    %v215 = vld [vmem:[#allocation8 + $0x20] sm:$0xf]
    %v216 = vld [vmem:[#allocation8 + $0x24] sm:$0xf]
    %v217 = vld [vmem:[#allocation8 + $0x28] sm:$0xf]
    %v218 = vld [vmem:[#allocation8 + $0x2c] sm:$0xf]
    %v219 = vld [vmem:[#allocation8 + $0x30] sm:$0xf]
    %v220 = vld [vmem:[#allocation8 + $0x34] sm:$0xf]
    %v221 = vld [vmem:[#allocation8 + $0x38] sm:$0xf]
    %v222 = vld [vmem:[#allocation8 + $0x3c] sm:$0xf]
    %v223 = vld [vmem:[%s6] sm:$0x1]
    %v225 = vperm.slane %v223, 0
    %v243 = vunpack.c.l.b16 %v207
    %v244 = vunpack.c.l.b16 %v208
    %v245 = vunpack.c.l.b16 %v209
    %v246 = vunpack.c.l.b16 %v210
    %v247 = vunpack.c.l.b16 %v211
    %v248 = vunpack.c.l.b16 %v212
    %v249 = vunpack.c.l.b16 %v213
    %v250 = vunpack.c.l.b16 %v214
    %v251 = vunpack.c.l.b16 %v215
    %v252 = vunpack.c.l.b16 %v216
    %v253 = vunpack.c.l.b16 %v217
    %v254 = vunpack.c.l.b16 %v218
    %v255 = vunpack.c.l.b16 %v219
    %v256 = vunpack.c.l.b16 %v220
    %v257 = vunpack.c.l.b16 %v221
    %v258 = vunpack.c.l.b16 %v222
    %v259 = vpack.c.b16 %v244, %v243
    %v260 = vpack.c.b16 %v246, %v245
    %v261 = vpack.c.b16 %v248, %v247
    %v262 = vpack.c.b16 %v250, %v249
    %v263 = vpack.c.b16 %v252, %v251
    %v264 = vpack.c.b16 %v254, %v253
    %v265 = vpack.c.b16 %v256, %v255
    %v266 = vpack.c.b16 %v258, %v257
    %275 = vmatpush.bf16.msra.mxu0 %v266
    %276 = vmatpush.bf16.msra.mxu0 %v265
    %277 = vmatpush.bf16.msra.mxu0 %v264
    %278 = vmatpush.bf16.msra.mxu0 %v263
    %279 = vmatpush.bf16.msra.mxu0 %v262
    %280 = vmatpush.bf16.msra.mxu0 %v261
    %281 = vmatpush.bf16.msra.mxu0 %v260
    %282 = vmatpush.bf16.msra.mxu0 %v259
    %283 = vmatmul.bf16.gmra.mxu0 %v206
    %v284 = vpop.f32.mrf.mxu0
    %v285 = vadd.f32 %v225, %v284
    %v286 = vpop.f32.mrf.mxu0
    %287 = vdwg.mxu0
    %288 = vmax.xlane.f32.xlu0 %v285
    %v289 = vpop.xlane.xlu0 %288
    %v290 = vsub.f32 %v285, %v289
    %v291 = vmul.f32 %v290, 1.442695
    %v292 = vpow.pop %v291
    %293 = vadd.xlane.f32.xlu0 %v292
    %v294 = vpop.xlane.xlu0 %293
    %v295 = vrcp.pop %v294
    %v296 = vmul.f32 %v294, %v295
    %v297 = vsub.f32 1.0, %v296
    %v298 = vmul.f32 %v295, %v297
    %v299 = vadd.f32 %v295, %v298
    %vm300 = vweird.f32 %v294
    %vm301 = vweird.f32 %v295
    %vm302 = vmor %vm300, %vm301
    %v303 = vsel %vm302, %v295, %v299
    %v304 = vand.u32 2147483647, %v294
    %vm305 = vcmp.eq.f32.partialorder %v304, 8.507059e+37
    %v306 = vand.u32 %v294, 2147483648
    %v307 = vor.u32 1.1754944e-38, %v306
    %v308 = vsel %vm305, %v307, %v303
    %v309 = vmul.f32 %v292, %v308
    %310 = vst [vmem:[#allocation10] sm:$0xff] %v309
    // Predicated region
    $region46: #{_policy_forward.1} parent=1 // pred_check
      _
    $region47: #{_policy_forward.1} parent=1 // pred_check_branch
      %312 = sbr.rel (0) target = $region49
    $region48: #{_policy_forward.1} parent=1 // pred_region
      %314 = vsyncadd [#allocation4], 64
      %s315 = sshll.u32 [#allocation10], 4
      %s316 = int_to_ptr.vmem [resolvable:$true] %s315
      %s317 = sshll.u32 %s7, 4
      %s318 = int_to_ptr.hbm [resolvable:$true] %s317
      %323 = dma.vmem_to_hbm [thread:$0]  %s316, 64, %s318, [#allocation4], 64, 64, 4
    $region49: #{_policy_forward.1} parent=1 // pred_fallthru
      _
    // Predicated region
    $region50: #{_policy_forward.1} parent=1 // pred_check
      _
    $region51: #{_policy_forward.1} parent=1 // pred_check_branch
      %325 = sbr.rel (0) target = $region53
    $region52: #{_policy_forward.1} parent=1 // pred_region
      %327 = dma.done [#allocation4], 128
    $region53: #{_policy_forward.1} parent=1 // pred_fallthru
      _
    %328 = vsyncpa [#allocation3], 1
    %329 = vsyncpa [#allocation6], 1
    %330 = vsyncpa [#allocation9], 1
    %331 = vsyncpa [#allocation4], 1

</llo_original>
